<compile_context>
chip_gen: v7x
topology: tpu7x:2x2x1
jax: 0.10.0
libtpu: 0.0.40
codegen_flags: <defaults>
</compile_context>

<pallas_src>
import functools

import jax
import jax.numpy as jnp
from jax.experimental import pallas as pl
from jax.experimental.pallas import tpu as pltpu


def _round_up(x: int, m: int) -> int:
    return ((x + m - 1) // m) * m


def loss_head_kernel(x_ref, w1_ref, b1_ref, wf1_ref, bf1_ref, w2_ref, b2_ref,
                     o_ref):
    # Backbone stand-in: h = relu(x @ W1 + b1)
    #   (TILE_B, D_in)bf16 @ (D_in, H)bf16 -> (TILE_B, H)f32 on the MXU.
    h = jnp.dot(x_ref[...], w1_ref[...], preferred_element_type=jnp.float32)
    h = jnp.maximum(h + b1_ref[...], 0.0)

    # fc[0] Linear(hidden, 16) with fc[1] eval-mode BatchNorm1d folded into the
    # weights/bias (done in the wrapper), then fc[2] ReLU.
    z = jnp.dot(h, wf1_ref[...], preferred_element_type=jnp.float32)
    a = jnp.maximum(z + bf1_ref[...], 0.0)            # (TILE_B, 16)

    # fc[3] Linear(16, 1): VPU multiply + lane reduction (keeps the MXU for the
    # backbone matmul; N=1 MXU matmul would waste nearly all result columns).
    logits = jnp.sum(a * w2_ref[...], axis=-1, keepdims=True)   # (TILE_B, 1)
    o_ref[...] = (logits + b2_ref[0]).astype(o_ref.dtype)


@functools.partial(jax.jit, static_argnames=("eps", "tile_b"))
def loss_head_forward(x, w1, b1, wf1, bf1, bn_gamma, bn_beta, bn_mean, bn_var,
                      w2, b2, *, eps: float = 1e-5, tile_b: int = 256):
    B, D_in = x.shape
    H = w1.shape[1]
    F = wf1.shape[1]

    # ---- Fold eval-mode BatchNorm1d into the preceding Linear --------------
    # BN(z) = (z - mean) * gamma / sqrt(var + eps) + beta
    #       = z * s + t  with  s = gamma * rsqrt(var + eps), t = beta - mean*s
    s = bn_gamma * jax.lax.rsqrt(bn_var + eps)                   # (F,)
    wf1_f = (wf1 * s[None, :]).astype(jnp.float32)               # (H, F)
    bf1_f = ((bf1 - bn_mean) * s + bn_beta).reshape(1, F).astype(jnp.float32)

    # ---- Operand layout / dtype plumbing ------------------------------------
    x_bf = x.astype(jnp.bfloat16)                                # bf16 MXU path
    w1_bf = w1.astype(jnp.bfloat16)
    b1_r = b1.reshape(1, H).astype(jnp.float32)
    w2_row = w2.reshape(1, F).astype(jnp.float32)                # (1, 16) row
    b2_s = b2.reshape(1).astype(jnp.float32)                     # SMEM scalar

    # ---- Batch tiling (pad ragged batch, (8,128) sublane rule) --------------
    tile_b = max(8, min(tile_b, _round_up(B, 8)))
    b_pad = _round_up(B, tile_b)
    if b_pad != B:
        x_bf = jnp.pad(x_bf, ((0, b_pad - B), (0, 0)))
    grid = (pl.cdiv(b_pad, tile_b),)

    out = pl.pallas_call(
        loss_head_kernel,
        out_shape=jax.ShapeDtypeStruct((b_pad, 1), jnp.float32),
        grid=grid,
        in_specs=[
            pl.BlockSpec((tile_b, D_in), lambda i: (i, 0)),      # x tile
            pl.BlockSpec((D_in, H), lambda i: (0, 0)),           # backbone W
            pl.BlockSpec((1, H), lambda i: (0, 0)),              # backbone b
            pl.BlockSpec((H, F), lambda i: (0, 0)),              # fc1 W (BN folded)
            pl.BlockSpec((1, F), lambda i: (0, 0)),              # fc1 b (BN folded)
            pl.BlockSpec((1, F), lambda i: (0, 0)),              # fc2 W as row
            pl.BlockSpec(memory_space=pltpu.MemorySpace.SMEM),   # fc2 b scalar
        ],
        out_specs=pl.BlockSpec((tile_b, 1), lambda i: (i, 0)),
        compiler_params=pltpu.CompilerParams(
            dimension_semantics=("parallel",),
            vmem_limit_bytes=32 * 1024 * 1024,   # fits v7x's smaller budget
        ),
    )(x_bf, w1_bf, b1_r, wf1_f, bf1_f, w2_row, b2_s)

    return out[:B]


def reference_forward(x, w1, b1, wf1, bf1, bn_gamma, bn_beta, bn_mean, bn_var,
                      w2, b2, eps=1e-5):
    h = jnp.maximum(x @ w1 + b1, 0.0)                 # backbone stand-in
    z = h @ wf1 + bf1                                  # Linear(hidden, 16)
    z = (z - bn_mean) * jax.lax.rsqrt(bn_var + eps) * bn_gamma + bn_beta
    z = jnp.maximum(z, 0.0)                            # ReLU
    return z @ w2 + b2                                 # Linear(16, 1)


if __name__ == "__main__":
    # Small shapes consistent with the module: batch=8, in_features=32,
    # hidden_dim=32, fc bottleneck=16.
    B, D_IN, HIDDEN, F = 8, 32, 32, 16

    key = jax.random.PRNGKey(0)
    keys = jax.random.split(key, 10)

    x = jax.random.normal(keys[0], (B, D_IN), dtype=jnp.float32)

    # Deterministic synthetic parameters (stand-in for a checkpoint).
    w1 = jax.random.normal(keys[1], (D_IN, HIDDEN), jnp.float32) * 0.1   # backbone
    b1 = jax.random.normal(keys[2], (HIDDEN,), jnp.float32) * 0.1
    wf1 = jax.random.normal(keys[3], (HIDDEN, F), jnp.float32) * 0.1     # Linear(hidden,16)
    bf1 = jax.random.normal(keys[4], (F,), jnp.float32) * 0.1
    bn_gamma = 1.0 + 0.1 * jax.random.normal(keys[5], (F,), jnp.float32)  # BatchNorm1d(16)
    bn_beta = 0.1 * jax.random.normal(keys[6], (F,), jnp.float32)
    bn_mean = 0.1 * jax.random.normal(keys[7], (F,), jnp.float32)
    bn_var = jax.random.uniform(keys[8], (F,), jnp.float32, 0.5, 1.5)
    w2 = jax.random.normal(keys[9], (F, 1), jnp.float32) * 0.1           # Linear(16,1)
    b2 = jnp.array([0.05], dtype=jnp.float32)

    out = loss_head_forward(x, w1, b1, wf1, bf1, bn_gamma, bn_beta, bn_mean,
                            bn_var, w2, b2)
    out = jax.block_until_ready(out)

    ref = reference_forward(x, w1, b1, wf1, bf1, bn_gamma, bn_beta, bn_mean,
                            bn_var, w2, b2)

    assert out.shape == (B, 1), out.shape
    # bf16 backbone operands -> loose-ish tolerance vs the pure-f32 reference.
    assert jnp.allclose(out, ref, atol=1e-2, rtol=1e-2), (out, ref)

    print("KERNEL_OK")
</pallas_src>

<mosaic_0001>
module attributes {stable_mosaic.version = 11 : i64} {
  func.func @loss_head_kernel(%arg0: i32, %arg1: memref<8x32xbf16, #tpu.memory_space<vmem>>, %arg2: memref<32x32xbf16, #tpu.memory_space<vmem>>, %arg3: memref<1x32xf32, #tpu.memory_space<vmem>>, %arg4: memref<32x16xf32, #tpu.memory_space<vmem>>, %arg5: memref<1x16xf32, #tpu.memory_space<vmem>>, %arg6: memref<1x16xf32, #tpu.memory_space<vmem>>, %arg7: memref<1xf32, #tpu.memory_space<smem>>, %arg8: memref<8x1xf32, #tpu.memory_space<vmem>>) attributes {dimension_semantics = [#tpu.dimension_semantics<parallel>], iteration_bounds = array<i64: 1>, scalar_prefetch = 0 : i64, scratch_operands = 0 : i64, tpu.core_type = #tpu.core_type<tc>, window_params = [{transform_indices = @transform_0, window_bounds = array<i64: 8, 32>}, {pipeline_mode = #tpu.pipeline_mode<synchronous>, transform_indices = @transform_1, window_bounds = array<i64: 32, 32>}, {pipeline_mode = #tpu.pipeline_mode<synchronous>, transform_indices = @transform_2, window_bounds = array<i64: 1, 32>}, {pipeline_mode = #tpu.pipeline_mode<synchronous>, transform_indices = @transform_3, window_bounds = array<i64: 32, 16>}, {pipeline_mode = #tpu.pipeline_mode<synchronous>, transform_indices = @transform_4, window_bounds = array<i64: 1, 16>}, {pipeline_mode = #tpu.pipeline_mode<synchronous>, transform_indices = @transform_5, window_bounds = array<i64: 1, 16>}, {transform_indices = @transform_6, window_bounds = array<i64: 1>}, {transform_indices = @transform_7, window_bounds = array<i64: 8, 1>}]} {
    %c0 = arith.constant 0 : index
    %c0_0 = arith.constant 0 : index
    %0 = vector.load %arg1[%c0, %c0_0] : memref<8x32xbf16, #tpu.memory_space<vmem>>, vector<8x32xbf16>
    %c0_1 = arith.constant 0 : index
    %c0_2 = arith.constant 0 : index
    %1 = vector.load %arg2[%c0_1, %c0_2] : memref<32x32xbf16, #tpu.memory_space<vmem>>, vector<32x32xbf16>
    %cst = arith.constant dense<0.000000e+00> : vector<8x32xf32>
    %2 = tpu.matmul %0, %1, %cst {dimension_numbers = #tpu.dot_dimension_numbers<[1], [0], [0], [1], [0, 0, 1, 1], [], []>} : vector<8x32xbf16>, vector<32x32xbf16>, vector<8x32xf32> -> vector<8x32xf32>
    %c0_3 = arith.constant 0 : index
    %c0_4 = arith.constant 0 : index
    %3 = vector.load %arg3[%c0_3, %c0_4] : memref<1x32xf32, #tpu.memory_space<vmem>>, vector<1x32xf32>
    %4 = vector.broadcast %3 : vector<1x32xf32> to vector<8x32xf32>
    %5 = arith.addf %2, %4 : vector<8x32xf32>
    %cst_5 = arith.constant 0.000000e+00 : f32
    %6 = vector.broadcast %cst_5 : f32 to vector<8x32xf32>
    %7 = arith.maximumf %5, %6 : vector<8x32xf32>
    %c0_6 = arith.constant 0 : index
    %c0_7 = arith.constant 0 : index
    %8 = vector.load %arg4[%c0_6, %c0_7] : memref<32x16xf32, #tpu.memory_space<vmem>>, vector<32x16xf32>
    %cst_8 = arith.constant dense<0.000000e+00> : vector<8x16xf32>
    %9 = tpu.matmul %7, %8, %cst_8 {dimension_numbers = #tpu.dot_dimension_numbers<[1], [0], [0], [1], [0, 0, 1, 1], [], []>} : vector<8x32xf32>, vector<32x16xf32>, vector<8x16xf32> -> vector<8x16xf32>
    %c0_9 = arith.constant 0 : index
    %c0_10 = arith.constant 0 : index
    %10 = vector.load %arg5[%c0_9, %c0_10] : memref<1x16xf32, #tpu.memory_space<vmem>>, vector<1x16xf32>
    %11 = vector.broadcast %10 : vector<1x16xf32> to vector<8x16xf32>
    %12 = arith.addf %9, %11 : vector<8x16xf32>
    %cst_11 = arith.constant 0.000000e+00 : f32
    %13 = vector.broadcast %cst_11 : f32 to vector<8x16xf32>
    %14 = arith.maximumf %12, %13 : vector<8x16xf32>
    %c0_12 = arith.constant 0 : index
    %c0_13 = arith.constant 0 : index
    %15 = vector.load %arg6[%c0_12, %c0_13] : memref<1x16xf32, #tpu.memory_space<vmem>>, vector<1x16xf32>
    %16 = vector.broadcast %15 : vector<1x16xf32> to vector<8x16xf32>
    %17 = arith.mulf %14, %16 : vector<8x16xf32>
    %cst_14 = arith.constant dense<0.000000e+00> : vector<8xf32>
    %18 = vector.multi_reduction <add>, %17, %cst_14 [1] : vector<8x16xf32> to vector<8xf32>
    %19 = vector.shape_cast %18 : vector<8xf32> to vector<8x1xf32>
    %c0_15 = arith.constant 0 : index
    %20 = memref.load %arg7[%c0_15] : memref<1xf32, #tpu.memory_space<smem>>
    %21 = vector.broadcast %20 : f32 to vector<8x1xf32>
    %22 = arith.addf %19, %21 : vector<8x1xf32>
    %c0_16 = arith.constant 0 : index
    %c0_17 = arith.constant 0 : index
    %23 = vector.load %arg8[%c0_16, %c0_17] : memref<8x1xf32, #tpu.memory_space<vmem>>, vector<8x1xf32>
    tpu.vector_store %arg8[%c0_16, %c0_17], %22 {strides = array<i32>} : memref<8x1xf32, #tpu.memory_space<vmem>>, vector<8x1xf32>,
    return
  }
  func.func @transform_0(%arg0: i32) -> (i32, i32) {
    %c0_i32 = arith.constant 0 : i32
    %c0_i32_0 = arith.constant 0 : i32
    return %arg0, %c0_i32 : i32, i32
  }
  func.func @transform_1(%arg0: i32) -> (i32, i32) {
    %c0_i32 = arith.constant 0 : i32
    %c0_i32_0 = arith.constant 0 : i32
    %c0_i32_1 = arith.constant 0 : i32
    return %c0_i32, %c0_i32_0 : i32, i32
  }
  func.func @transform_2(%arg0: i32) -> (i32, i32) {
    %c0_i32 = arith.constant 0 : i32
    %c0_i32_0 = arith.constant 0 : i32
    %c0_i32_1 = arith.constant 0 : i32
    return %c0_i32, %c0_i32_0 : i32, i32
  }
  func.func @transform_3(%arg0: i32) -> (i32, i32) {
    %c0_i32 = arith.constant 0 : i32
    %c0_i32_0 = arith.constant 0 : i32
    %c0_i32_1 = arith.constant 0 : i32
    return %c0_i32, %c0_i32_0 : i32, i32
  }
  func.func @transform_4(%arg0: i32) -> (i32, i32) {
    %c0_i32 = arith.constant 0 : i32
    %c0_i32_0 = arith.constant 0 : i32
    %c0_i32_1 = arith.constant 0 : i32
    return %c0_i32, %c0_i32_0 : i32, i32
  }
  func.func @transform_5(%arg0: i32) -> (i32, i32) {
    %c0_i32 = arith.constant 0 : i32
    %c0_i32_0 = arith.constant 0 : i32
    %c0_i32_1 = arith.constant 0 : i32
    return %c0_i32, %c0_i32_0 : i32, i32
  }
  func.func @transform_6(%arg0: i32) -> i32 {
    %c0_i32 = arith.constant 0 : i32
    %c0_i32_0 = arith.constant 0 : i32
    return %c0_i32 : i32
  }
  func.func @transform_7(%arg0: i32) -> (i32, i32) {
    %c0_i32 = arith.constant 0 : i32
    %c0_i32_0 = arith.constant 0 : i32
    return %arg0, %c0_i32 : i32, i32
  }
}

</mosaic_0001>

<llo_original>
// kernel: loss_head_forward.1
$region0: #{loss_head_forward.1}
  #allocation0 [shape = 'u32[]', space=smem, size = 0x4, offset = 0x4, fixed_abs, tag = 'smem constant byte address 0x4 - core index']
  #allocation1 [shape = 'u32[144,128]{1,0:T(1,128)}', space=vmem, size = 0x12000, scoped, tag = 'internal scratch']
  #allocation2 [shape = 'f32[1]{0:T(128)S(6)}', space=smem, size = 0x200, scoped, tag = 'scoped memory for loss_head_forward.1']
  %s0 = inlined_call_operand.vmem [shape: bf16[8,32], index: 0, kind: input, shape index: {}]
  %s1 = inlined_call_operand.vmem [shape: bf16[32,32], index: 1, kind: input, shape index: {}]
  %s2 = inlined_call_operand.vmem [shape: f32[1,32], index: 2, kind: input, shape index: {}]
  %s3 = inlined_call_operand.vmem [shape: f32[32,16], index: 3, kind: input, shape index: {}]
  %s4 = inlined_call_operand.vmem [shape: f32[1,16], index: 4, kind: input, shape index: {}]
  %s5 = inlined_call_operand.vmem [shape: f32[1,16], index: 5, kind: input, shape index: {}]
  %s6 = inlined_call_operand.<no memory space> [shape: f32[1], index: 6, kind: input, shape index: {}]
  %s7 = inlined_call_operand.vmem [shape: f32[8,1], index: 7, kind: output, shape index: {}]
  %s8 = sld [smem:[#allocation0]]
  $region38: #{loss_head_forward.1} parent=0
    _
  %s10 = ssub.s32 1, %s8
  %s11 = scalar_select 0, %s10, %s8
  %12 = sst [smem:[#allocation2]] %s6
  // Predicated region
  $region2: #{loss_head_forward.1} parent=0 // pred_check
    _
  $region3: #{loss_head_forward.1} parent=0 // pred_check_branch
    %14 = sbr.rel (0) target = $region5
  $region4: #{loss_head_forward.1} parent=0 // pred_region
    _
  $region5: #{loss_head_forward.1} parent=0 // pred_fallthru
    _
  // Predicated region
  $region6: #{loss_head_forward.1} parent=0 // pred_check
    _
  $region7: #{loss_head_forward.1} parent=0 // pred_check_branch
    %16 = sbr.rel (0) target = $region9
  $region8: #{loss_head_forward.1} parent=0 // pred_region
    _
  $region9: #{loss_head_forward.1} parent=0 // pred_fallthru
    _
  // Predicated region
  $region10: #{loss_head_forward.1} parent=0 // pred_check
    _
  $region11: #{loss_head_forward.1} parent=0 // pred_check_branch
    %18 = sbr.rel (0) target = $region13
  $region12: #{loss_head_forward.1} parent=0 // pred_region
    _
  $region13: #{loss_head_forward.1} parent=0 // pred_fallthru
    _
  // Predicated region
  $region14: #{loss_head_forward.1} parent=0 // pred_check
    _
  $region15: #{loss_head_forward.1} parent=0 // pred_check_branch
    %20 = sbr.rel (0) target = $region17
  $region16: #{loss_head_forward.1} parent=0 // pred_region
    _
  $region17: #{loss_head_forward.1} parent=0 // pred_fallthru
    _
  // Predicated region
  $region18: #{loss_head_forward.1} parent=0 // pred_check
    _
  $region19: #{loss_head_forward.1} parent=0 // pred_check_branch
    %22 = sbr.rel (0) target = $region21
  $region20: #{loss_head_forward.1} parent=0 // pred_region
    _
  $region21: #{loss_head_forward.1} parent=0 // pred_fallthru
    _
  // Predicated region
  $region22: #{loss_head_forward.1} parent=0 // pred_check
    _
  $region23: #{loss_head_forward.1} parent=0 // pred_check_branch
    %24 = sbr.rel (0) target = $region25
  $region24: #{loss_head_forward.1} parent=0 // pred_region
    _
  $region25: #{loss_head_forward.1} parent=0 // pred_fallthru
    _
  // Predicated region
  $region26: #{loss_head_forward.1} parent=0 // pred_check
    _
  $region27: #{loss_head_forward.1} parent=0 // pred_check_branch
    %26 = sbr.rel (0) target = $region29
  $region28: #{loss_head_forward.1} parent=0 // pred_region
    _
  $region29: #{loss_head_forward.1} parent=0 // pred_fallthru
    _
  %v28 = vld [vmem:[%s0] sm:$0xf]
  %v29 = vld [vmem:[%s1] sm:$0xf]
  %v30 = vld [vmem:[%s1 + $0x4] sm:$0xf]
  %v31 = vld [vmem:[%s1 + $0x8] sm:$0xf]
  %v32 = vld [vmem:[%s1 + $0xc] sm:$0xf]
  %v33 = vld [vmem:[%s2] sm:$0x1]
  %v35 = vlaneseq
  %v36 = vshrl.u32 %v35, 7
  %v37 = vsub.s32 0, %v36
  %v38 = vrot.slane %v33, %v37
  %v44 = vunpack.c.l.b16 %v29
  %v45 = vunpack.c.l.b16 %v30
  %v46 = vunpack.c.l.b16 %v31
  %v47 = vunpack.c.l.b16 %v32
  %v48 = vpack.c.b16 %v45, %v44
  %v49 = vpack.c.b16 %v47, %v46
  %vm52 = vcmask 261120
  %v54 = vsel %vm52, %v28, 0
  %56 = vmatprep.subr.bf16.mxu0 0
  %57 = vmatpush1.bf16.msra.mxu0 %v48
  %58 = vmatprep.subr.bf16.mxu0 0
  %59 = vmatpush1.bf16.msra.mxu0 %v49
  %60 = vmatprep.subr.bf16.mxu0 0
  %61 = vmatpush1.bf16.msra.mxu0 0
  %62 = vmatprep.subr.bf16.mxu0 0
  %63 = vmatpush1.bf16.msra.mxu0 0
  %64 = vmatprep.subr.bf16.mxu0 0
  %65 = vmatpush1.bf16.msra.mxu0 0
  %66 = vmatprep.subr.bf16.mxu0 0
  %67 = vmatpush1.bf16.msra.mxu0 0
  %68 = vmatprep.subr.bf16.mxu0 0
  %69 = vmatpush1.bf16.msra.mxu0 0
  %70 = vmatprep.subr.bf16.mxu0 0
  %71 = vmatpush1.bf16.msra.mxu0 0
  %72 = vmatprep.subr.bf16.mxu0 0
  %73 = vmatpush1.bf16.msra.mxu0 0
  %74 = vmatprep.subr.bf16.mxu0 0
  %75 = vmatpush1.bf16.msra.mxu0 0
  %76 = vmatprep.subr.bf16.mxu0 0
  %77 = vmatpush1.bf16.msra.mxu0 0
  %78 = vmatprep.subr.bf16.mxu0 0
  %79 = vmatpush1.bf16.msra.mxu0 0
  %80 = vmatprep.subr.bf16.mxu0 0
  %81 = vmatpush1.bf16.msra.mxu0 0
  %82 = vmatprep.subr.bf16.mxu0 0
  %83 = vmatpush1.bf16.msra.mxu0 0
  %84 = vmatprep.subr.bf16.mxu0 0
  %85 = vmatpush1.bf16.msra.mxu0 0
  %86 = vmatprep.subr.bf16.mxu0 0
  %87 = vmatpush1.bf16.msra.mxu0 0
  %88 = vmatprep.mubr.bf16.mxu0 0
  %89 = vmatmul.mubr.bf16.gmra.mrb[0].mxu0 %v54
  %v90 = vpop.f32.mrb[0].mxu0
  %v91 = vadd.f32 %v38, %v90
  %v92 = vpop.f32.mrb[0].mxu0
  %v93 = vpop.f32.mrb[0].mxu0
  %v94 = vpop.f32.mrb[0].mxu0
  %95 = vdwg.mxu0
  %v96 = vmax.f32 %v91, 0.0
  %v97 = vld [vmem:[%s3] sm:$0xff]
  %v98 = vld [vmem:[%s3 + $0x8] sm:$0xff]
  %v99 = vld [vmem:[%s3 + $0x10] sm:$0xff]
  %v100 = vld [vmem:[%s3 + $0x18] sm:$0xff]
  %v101 = vld [vmem:[%s4] sm:$0x1]
  %v103 = vlaneseq
  %v104 = vshrl.u32 %v103, 7
  %v105 = vsub.s32 0, %v104
  %v106 = vrot.slane %v101, %v105
  %v109 = vsel %vm52, %v96, 0
  %111 = vmatprep.subr.mxu0 0.0
  %112 = vmatpush1.msra.mxu0 %v97
  %113 = vmatprep.subr.mxu0 0.0
  %114 = vmatpush1.msra.mxu0 %v98
  %115 = vmatprep.subr.mxu0 0.0
  %116 = vmatpush1.msra.mxu0 %v99
  %117 = vmatprep.subr.mxu0 0.0
  %118 = vmatpush1.msra.mxu0 %v100
  %119 = vmatprep.subr.mxu0 0.0
  %120 = vmatpush1.msra.mxu0 0.0
  %121 = vmatprep.subr.mxu0 0.0
  %122 = vmatpush1.msra.mxu0 0.0
  %123 = vmatprep.subr.mxu0 0.0
  %124 = vmatpush1.msra.mxu0 0.0
  %125 = vmatprep.subr.mxu0 0.0
  %126 = vmatpush1.msra.mxu0 0.0
  %127 = vmatprep.subr.mxu0 0.0
  %128 = vmatpush1.msra.mxu0 0.0
  %129 = vmatprep.subr.mxu0 0.0
  %130 = vmatpush1.msra.mxu0 0.0
  %131 = vmatprep.subr.mxu0 0.0
  %132 = vmatpush1.msra.mxu0 0.0
  %133 = vmatprep.subr.mxu0 0.0
  %134 = vmatpush1.msra.mxu0 0.0
  %135 = vmatprep.subr.mxu0 0.0
  %136 = vmatpush1.msra.mxu0 0.0
  %137 = vmatprep.subr.mxu0 0.0
  %138 = vmatpush1.msra.mxu0 0.0
  %139 = vmatprep.subr.mxu0 0.0
  %140 = vmatpush1.msra.mxu0 0.0
  %141 = vmatprep.subr.mxu0 0.0
  %142 = vmatpush1.msra.mxu0 0.0
  %143 = vmatprep.subr.mxu0 0.0
  %144 = vmatpush1.msra.mxu0 0.0
  %145 = vmatprep.subr.mxu0 0.0
  %146 = vmatpush1.msra.mxu0 0.0
  %147 = vmatprep.subr.mxu0 0.0
  %148 = vmatpush1.msra.mxu0 0.0
  %149 = vmatprep.subr.mxu0 0.0
  %150 = vmatpush1.msra.mxu0 0.0
  %151 = vmatprep.subr.mxu0 0.0
  %152 = vmatpush1.msra.mxu0 0.0
  %153 = vmatprep.subr.mxu0 0.0
  %154 = vmatpush1.msra.mxu0 0.0
  %155 = vmatprep.subr.mxu0 0.0
  %156 = vmatpush1.msra.mxu0 0.0
  %157 = vmatprep.subr.mxu0 0.0
  %158 = vmatpush1.msra.mxu0 0.0
  %159 = vmatprep.subr.mxu0 0.0
  %160 = vmatpush1.msra.mxu0 0.0
  %161 = vmatprep.subr.mxu0 0.0
  %162 = vmatpush1.msra.mxu0 0.0
  %163 = vmatprep.subr.mxu0 0.0
  %164 = vmatpush1.msra.mxu0 0.0
  %165 = vmatprep.subr.mxu0 0.0
  %166 = vmatpush1.msra.mxu0 0.0
  %167 = vmatprep.subr.mxu0 0.0
  %168 = vmatpush1.msra.mxu0 0.0
  %169 = vmatprep.subr.mxu0 0.0
  %170 = vmatpush1.msra.mxu0 0.0
  %171 = vmatprep.subr.mxu0 0.0
  %172 = vmatpush1.msra.mxu0 0.0
  %173 = vmatprep.subr.mxu0 0.0
  %174 = vmatpush1.msra.mxu0 0.0
  %175 = vmatprep.mubr.f32.mxu0 0.0
  %176 = vmatmul.mubr.f32.gmra.mrb[0].mxu0 %v109
  %v177 = vpop.f32.mrb[0].mxu0
  %v178 = vadd.f32 %v106, %v177
  %v179 = vpop.f32.mrb[0].mxu0
  %180 = vdwg.mxu0
  %v181 = vmax.f32 %v178, 0.0
  %v182 = vld [vmem:[%s5] sm:$0x1]
  %v184 = vlaneseq
  %v185 = vshrl.u32 %v184, 7
  %v186 = vsub.s32 0, %v185
  %v187 = vrot.slane %v182, %v186
  %v189 = vmul.f32 %v181, %v187
  %vm190 = vcmask 130048
  %v191 = vsel %vm190, %v189, 0.0
  %192 = vadd.xlane.f32.xlu0 %v191
  %v193 = vpop.xlane.xlu0 %192
  %s194 = sld [smem:[#allocation2]]
  %v195 = vstv %s194
  %v196 = vadd.f32 %v193, %v195
  %vm197 = vcmask 7168
  %198 = vst.msk [vmem:[%s7] sm:$0xff] %vm197, %v196
  // Predicated region
  $region30: #{loss_head_forward.1} parent=0 // pred_check
    _
  $region31: #{loss_head_forward.1} parent=0 // pred_check_branch
    %200 = sbr.rel (0) target = $region33
  $region32: #{loss_head_forward.1} parent=0 // pred_region
    _
  $region33: #{loss_head_forward.1} parent=0 // pred_fallthru
    _
  // Predicated region
  $region34: #{loss_head_forward.1} parent=0 // pred_check
    _
  $region35: #{loss_head_forward.1} parent=0 // pred_check_branch
    %202 = sbr.rel (0) target = $region37
  $region36: #{loss_head_forward.1} parent=0 // pred_region
    _
  $region37: #{loss_head_forward.1} parent=0 // pred_fallthru
    _

</llo_original>
